<compile_context>
chip_gen: v5e
topology: v5e:2x2
jax: 0.10.0
libtpu: 0.0.40
codegen_flags: <defaults>
</compile_context>

<pallas_src>
import functools

import jax
import jax.numpy as jnp
import numpy as np
from jax.experimental import pallas as pl
from jax.experimental.pallas import tpu as pltpu


# ---------------------------------------------------------------------------
# Kernels
# ---------------------------------------------------------------------------

def _ltam_mxu_kernel(x_ref, pool_ref, exp_ref, w1t_ref, w2t_ref, o_ref, *, inv_hw):
    """Lane-dense path: x blocked as (bt, C*HW); pool & broadcast on the MXU."""
    xs = x_ref[...]                                             # (bt, C*HW), native dtype
    # Spatial pooling on the MXU via a 0/1 block-diagonal matrix (f32 accumulate).
    pooled = jnp.dot(xs, pool_ref[...], preferred_element_type=jnp.float32)
    avg = pooled * inv_hw                                       # (bt, C) f32
    # fc1 + ReLU, fc2 + sigmoid (tiny matmuls on resident pre-transposed weights).
    h = jnp.maximum(jnp.dot(avg, w1t_ref[...], preferred_element_type=jnp.float32), 0.0)
    att = jax.nn.sigmoid(jnp.dot(h, w2t_ref[...], preferred_element_type=jnp.float32))
    # Broadcast attention over spatial positions on the MXU (0/1 expansion
    # matrix), cast to native dtype, one lane-dense elementwise multiply+store.
    att_full = jnp.dot(att.astype(xs.dtype), exp_ref[...],
                       preferred_element_type=jnp.float32).astype(xs.dtype)
    o_ref[...] = xs * att_full


def _ltam_reduce_kernel(x_ref, w1t_ref, w2t_ref, o_ref, *, inv_hw):
    """Fallback for very large C: x blocked as (bt, C, HW), XLU spatial reduce."""
    xs = x_ref[...]                                             # (bt, C, HW), native dtype
    avg = jnp.sum(xs, axis=-1, dtype=jnp.float32) * inv_hw      # f32 accumulation
    h = jnp.maximum(jnp.dot(avg, w1t_ref[...], preferred_element_type=jnp.float32), 0.0)
    att = jax.nn.sigmoid(jnp.dot(h, w2t_ref[...], preferred_element_type=jnp.float32))
    o_ref[...] = xs * att.astype(xs.dtype)[:, :, None]


# ---------------------------------------------------------------------------
# Tiling policy
# ---------------------------------------------------------------------------

def _choose_bt_tile(bt, row_bytes, *, budget_bytes=20 << 20, min_tile_bytes=1 << 20,
                    target_steps=8):
    """Rows (fused batch*time) per grid step.

    Hard cap: ~6x row working set (2x double-buffered in + 2x out + temps)
    inside a ~20 MiB budget (safe on v7x's 64 MiB VMEM).  Floors: >= ~1 MiB per
    block (amortize per-step overhead) and >= target_steps grid steps so both
    v7x TensorCores keep a pipelined stream of work.
    """
    max_rows = max(8, budget_bytes // (6 * row_bytes))
    rows_for_size = -(-min_tile_bytes // row_bytes)
    rows_for_steps = -(-bt // target_steps)
    tile = max(rows_for_size, rows_for_steps, 1)
    tile = min(tile, max_rows)
    tile = -(-tile // 8) * 8                    # sublane alignment
    if tile >= bt:
        return int(bt)                          # single full-extent block
    # Prefer an even number of grid steps for TensorCore load balance.
    steps = -(-bt // tile)
    if steps > 1 and steps % 2 == 1:
        alt_rows = -(-bt // (steps + 1))
        alt = -(-alt_rows // 8) * 8
        if 8 <= alt < tile:
            tile = alt
    return int(tile)


# ---------------------------------------------------------------------------
# Wrapper
# ---------------------------------------------------------------------------

def lightweight_temporal_attention(x, w1, w2, *, bt_tile=None, pool_via_mxu=None):
    """Forward pass.

    x:  (B, T, C, H, W)
    w1: (C//r, C)   fc1.weight (PyTorch layout, bias=False)
    w2: (C, C//r)   fc2.weight (PyTorch layout, bias=False)
    """
    B, T, C, H, W = x.shape
    HW = H * W
    CHW = C * HW
    BT = B * T
    Cr = w1.shape[0]
    itemsize = jnp.dtype(x.dtype).itemsize
    inv_hw = float(1.0 / HW)

    # Pre-transposed f32 weights, resident across the grid.
    w1t = jnp.asarray(w1, dtype=jnp.float32).T          # (C, Cr)
    w2t = jnp.asarray(w2, dtype=jnp.float32).T          # (Cr, C)

    # Helper matrices for the MXU pool/broadcast path; fall back to the XLU
    # reduce path when they would be too large to keep resident in VMEM.
    helper_bytes = CHW * C * itemsize
    if pool_via_mxu is None:
        pool_via_mxu = helper_bytes <= (4 << 20)

    row_bytes = CHW * itemsize
    if bt_tile is None:
        bt_tile = _choose_bt_tile(BT, row_bytes)
    bt_tile = int(min(bt_tile, BT))
    if bt_tile < BT and bt_tile % 8 != 0:
        bt_tile = min(BT, -(-bt_tile // 8) * 8)
    num_steps = -(-BT // bt_tile)                        # ragged tail allowed

    block_bytes = bt_tile * row_bytes
    extra_bytes = (2 * helper_bytes if pool_via_mxu else 0) + 2 * C * Cr * 4
    needed = 6 * block_bytes + extra_bytes + (2 << 20)
    vmem_bytes = int(min(48 << 20, max(24 << 20, needed)))

    flops = 2 * BT * CHW + 4 * BT * C * Cr               # out multiply + fc1/fc2
    flops += 4 * BT * CHW * C if pool_via_mxu else BT * CHW
    cost = pl.CostEstimate(
        flops=int(flops),
        transcendentals=int(BT * C),
        bytes_accessed=int(2 * BT * CHW * itemsize),     # memory-bound: read+write x
    )
    cparams = pltpu.CompilerParams(
        dimension_semantics=("parallel",),
        vmem_limit_bytes=vmem_bytes,
    )

    if pool_via_mxu:
        x2d = x.reshape(BT, CHW)                         # free (contiguous) reshape
        chan_of_pos = jnp.arange(CHW, dtype=jnp.int32) // HW
        chan = jnp.arange(C, dtype=jnp.int32)
        pool_mat = (chan_of_pos[:, None] == chan[None, :]).astype(x.dtype)  # (CHW, C)
        exp_mat = (chan[:, None] == chan_of_pos[None, :]).astype(x.dtype)   # (C, CHW)

        out2d = pl.pallas_call(
            functools.partial(_ltam_mxu_kernel, inv_hw=inv_hw),
            out_shape=jax.ShapeDtypeStruct((BT, CHW), x.dtype),
            grid_spec=pltpu.PrefetchScalarGridSpec(
                num_scalar_prefetch=0,
                grid=(num_steps,),
                in_specs=[
                    pl.BlockSpec((bt_tile, CHW), lambda i: (i, 0)),
                    pl.BlockSpec((CHW, C), lambda i: (0, 0)),
                    pl.BlockSpec((C, CHW), lambda i: (0, 0)),
                    pl.BlockSpec((C, Cr), lambda i: (0, 0)),
                    pl.BlockSpec((Cr, C), lambda i: (0, 0)),
                ],
                out_specs=pl.BlockSpec((bt_tile, CHW), lambda i: (i, 0)),
            ),
            compiler_params=cparams,
            cost_estimate=cost,
        )(x2d, pool_mat, exp_mat, w1t, w2t)
        return out2d.reshape(B, T, C, H, W)

    # Fallback: (bt, C, HW) blocking with an XLU spatial reduce (large C).
    x3d = x.reshape(BT, C, HW)                           # free (contiguous) reshape
    out3d = pl.pallas_call(
        functools.partial(_ltam_reduce_kernel, inv_hw=inv_hw),
        out_shape=jax.ShapeDtypeStruct((BT, C, HW), x.dtype),
        grid_spec=pltpu.PrefetchScalarGridSpec(
            num_scalar_prefetch=0,
            grid=(num_steps,),
            in_specs=[
                pl.BlockSpec((bt_tile, C, HW), lambda i: (i, 0, 0)),
                pl.BlockSpec((C, Cr), lambda i: (0, 0)),
                pl.BlockSpec((Cr, C), lambda i: (0, 0)),
            ],
            out_specs=pl.BlockSpec((bt_tile, C, HW), lambda i: (i, 0, 0)),
        ),
        compiler_params=cparams,
        cost_estimate=cost,
    )(x3d, w1t, w2t)
    return out3d.reshape(B, T, C, H, W)


# ---------------------------------------------------------------------------
# Reference & test
# ---------------------------------------------------------------------------

def _reference(x, w1, w2):
    B, T, C, H, W = x.shape
    avg = x.reshape(B, T, C, H * W).mean(axis=-1)                    # (B, T, C)
    h = jnp.maximum(jnp.einsum("btc,rc->btr", avg, w1), 0.0)
    att = jax.nn.sigmoid(jnp.einsum("btr,cr->btc", h, w2))[..., None, None]
    return x * att


if __name__ == "__main__":
    # Small shapes consistent with the module: B=2, T=8, C=8, H=W=16, r=4.
    B, T, C, H, W = 2, 8, 8, 16, 16
    reduction_ratio = 4
    Cr = C // reduction_ratio

    key = jax.random.PRNGKey(0)
    kx, k1, k2 = jax.random.split(key, 3)
    x = jax.random.normal(kx, (B, T, C, H, W), dtype=jnp.float32)
    # fc1/fc2 weights (bias=False, PyTorch layouts).
    w1 = jax.random.normal(k1, (Cr, C), dtype=jnp.float32) * 0.1
    w2 = jax.random.normal(k2, (C, Cr), dtype=jnp.float32) * 0.1

    ref = _reference(x, w1, w2)

    # Primary lane-dense (MXU pool/broadcast) path.
    out = jax.block_until_ready(lightweight_temporal_attention(x, w1, w2))
    assert out.shape == (B, T, C, H, W)
    np.testing.assert_allclose(np.asarray(out), np.asarray(ref), atol=1e-5, rtol=1e-5)

    # Fallback reduce path (used automatically when C is very large).
    out_fb = jax.block_until_ready(
        lightweight_temporal_attention(x, w1, w2, pool_via_mxu=False))
    np.testing.assert_allclose(np.asarray(out_fb), np.asarray(ref), atol=1e-5, rtol=1e-5)

    # Ragged tail: BT=15 with bt_tile=8 -> partial trailing block, no jnp.pad
    # and no output slice anywhere in the wrapper.
    B2, T2 = 3, 5
    x2 = jax.random.normal(kx, (B2, T2, C, H, W), dtype=jnp.float32)
    out2 = jax.block_until_ready(
        lightweight_temporal_attention(x2, w1, w2, bt_tile=8))
    np.testing.assert_allclose(np.asarray(out2), np.asarray(_reference(x2, w1, w2)),
                               atol=1e-5, rtol=1e-5)

    print("KERNEL_OK")
</pallas_src>

<mosaic_0001>
module attributes {stable_mosaic.version = 11 : i64} {
  func.func @_ltam_mxu_kernel(%arg0: i32, %arg1: memref<16x2048xf32, #tpu.memory_space<vmem>>, %arg2: memref<2048x8xf32, #tpu.memory_space<vmem>>, %arg3: memref<8x2048xf32, #tpu.memory_space<vmem>>, %arg4: memref<8x2xf32, #tpu.memory_space<vmem>>, %arg5: memref<2x8xf32, #tpu.memory_space<vmem>>, %arg6: memref<16x2048xf32, #tpu.memory_space<vmem>>) attributes {dimension_semantics = [#tpu.dimension_semantics<parallel>], iteration_bounds = array<i64: 1>, scalar_prefetch = 0 : i64, scratch_operands = 0 : i64, tpu.core_type = #tpu.core_type<tc>, window_params = [{transform_indices = @transform_0, window_bounds = array<i64: 16, 2048>}, {pipeline_mode = #tpu.pipeline_mode<synchronous>, transform_indices = @transform_1, window_bounds = array<i64: 2048, 8>}, {pipeline_mode = #tpu.pipeline_mode<synchronous>, transform_indices = @transform_2, window_bounds = array<i64: 8, 2048>}, {pipeline_mode = #tpu.pipeline_mode<synchronous>, transform_indices = @transform_3, window_bounds = array<i64: 8, 2>}, {pipeline_mode = #tpu.pipeline_mode<synchronous>, transform_indices = @transform_4, window_bounds = array<i64: 2, 8>}, {transform_indices = @transform_5, window_bounds = array<i64: 16, 2048>}]} {
    %c0 = arith.constant 0 : index
    %c0_0 = arith.constant 0 : index
    %0 = vector.load %arg1[%c0, %c0_0] : memref<16x2048xf32, #tpu.memory_space<vmem>>, vector<16x2048xf32>
    %c0_1 = arith.constant 0 : index
    %c0_2 = arith.constant 0 : index
    %1 = vector.load %arg2[%c0_1, %c0_2] : memref<2048x8xf32, #tpu.memory_space<vmem>>, vector<2048x8xf32>
    %cst = arith.constant dense<0.000000e+00> : vector<16x8xf32>
    %2 = tpu.matmul %0, %1, %cst {dimension_numbers = #tpu.dot_dimension_numbers<[1], [0], [0], [1], [0, 0, 1, 1], [], []>} : vector<16x2048xf32>, vector<2048x8xf32>, vector<16x8xf32> -> vector<16x8xf32>
    %cst_3 = arith.constant 3.906250e-03 : f32
    %3 = vector.broadcast %cst_3 : f32 to vector<16x8xf32>
    %4 = arith.mulf %2, %3 : vector<16x8xf32>
    %c0_4 = arith.constant 0 : index
    %c0_5 = arith.constant 0 : index
    %5 = vector.load %arg4[%c0_4, %c0_5] : memref<8x2xf32, #tpu.memory_space<vmem>>, vector<8x2xf32>
    %cst_6 = arith.constant dense<0.000000e+00> : vector<16x2xf32>
    %6 = tpu.matmul %4, %5, %cst_6 {dimension_numbers = #tpu.dot_dimension_numbers<[1], [0], [0], [1], [0, 0, 1, 1], [], []>} : vector<16x8xf32>, vector<8x2xf32>, vector<16x2xf32> -> vector<16x2xf32>
    %cst_7 = arith.constant 0.000000e+00 : f32
    %7 = vector.broadcast %cst_7 : f32 to vector<16x2xf32>
    %8 = arith.maximumf %6, %7 : vector<16x2xf32>
    %c0_8 = arith.constant 0 : index
    %c0_9 = arith.constant 0 : index
    %9 = vector.load %arg5[%c0_8, %c0_9] : memref<2x8xf32, #tpu.memory_space<vmem>>, vector<2x8xf32>
    %cst_10 = arith.constant dense<0.000000e+00> : vector<16x8xf32>
    %10 = tpu.matmul %8, %9, %cst_10 {dimension_numbers = #tpu.dot_dimension_numbers<[1], [0], [0], [1], [0, 0, 1, 1], [], []>} : vector<16x2xf32>, vector<2x8xf32>, vector<16x8xf32> -> vector<16x8xf32>
    %11 = arith.negf %10 : vector<16x8xf32>
    %12 = math.exp %11 : vector<16x8xf32>
    %cst_11 = arith.constant 1.000000e+00 : f32
    %13 = vector.broadcast %cst_11 : f32 to vector<16x8xf32>
    %14 = arith.addf %13, %12 : vector<16x8xf32>
    %15 = arith.divf %13, %14 : vector<16x8xf32>
    %c0_12 = arith.constant 0 : index
    %c0_13 = arith.constant 0 : index
    %16 = vector.load %arg3[%c0_12, %c0_13] : memref<8x2048xf32, #tpu.memory_space<vmem>>, vector<8x2048xf32>
    %cst_14 = arith.constant dense<0.000000e+00> : vector<16x2048xf32>
    %17 = tpu.matmul %15, %16, %cst_14 {dimension_numbers = #tpu.dot_dimension_numbers<[1], [0], [0], [1], [0, 0, 1, 1], [], []>} : vector<16x8xf32>, vector<8x2048xf32>, vector<16x2048xf32> -> vector<16x2048xf32>
    %18 = arith.mulf %0, %17 : vector<16x2048xf32>
    %c0_15 = arith.constant 0 : index
    %c0_16 = arith.constant 0 : index
    %19 = vector.load %arg6[%c0_15, %c0_16] : memref<16x2048xf32, #tpu.memory_space<vmem>>, vector<16x2048xf32>
    tpu.vector_store %arg6[%c0_15, %c0_16], %18 {strides = array<i32>} : memref<16x2048xf32, #tpu.memory_space<vmem>>, vector<16x2048xf32>,
    return
  }
  func.func @transform_0(%arg0: i32) -> (i32, i32) {
    %c0_i32 = arith.constant 0 : i32
    %c0_i32_0 = arith.constant 0 : i32
    return %arg0, %c0_i32 : i32, i32
  }
  func.func @transform_1(%arg0: i32) -> (i32, i32) {
    %c0_i32 = arith.constant 0 : i32
    %c0_i32_0 = arith.constant 0 : i32
    %c0_i32_1 = arith.constant 0 : i32
    return %c0_i32, %c0_i32_0 : i32, i32
  }
  func.func @transform_2(%arg0: i32) -> (i32, i32) {
    %c0_i32 = arith.constant 0 : i32
    %c0_i32_0 = arith.constant 0 : i32
    %c0_i32_1 = arith.constant 0 : i32
    return %c0_i32, %c0_i32_0 : i32, i32
  }
  func.func @transform_3(%arg0: i32) -> (i32, i32) {
    %c0_i32 = arith.constant 0 : i32
    %c0_i32_0 = arith.constant 0 : i32
    %c0_i32_1 = arith.constant 0 : i32
    return %c0_i32, %c0_i32_0 : i32, i32
  }
  func.func @transform_4(%arg0: i32) -> (i32, i32) {
    %c0_i32 = arith.constant 0 : i32
    %c0_i32_0 = arith.constant 0 : i32
    %c0_i32_1 = arith.constant 0 : i32
    return %c0_i32, %c0_i32_0 : i32, i32
  }
  func.func @transform_5(%arg0: i32) -> (i32, i32) {
    %c0_i32 = arith.constant 0 : i32
    %c0_i32_0 = arith.constant 0 : i32
    return %arg0, %c0_i32 : i32, i32
  }
}

</mosaic_0001>

<llo_original>
// kernel: tpu_custom_call.1
$region0: #{tpu_custom_call.1}
  #allocation0 [shape = 'u32[]', space=smem, size = 0x4, offset = 0x4, fixed_abs, tag = 'smem constant byte address 0x4 - core index']
  #allocation1 [shape = 'u32[72,128]{1,0:T(1,128)}', space=vmem, size = 0x9000, scoped, tag = 'internal scratch']
  %s0 = inlined_call_operand.vmem [shape: f32[16,2048], index: 0, kind: input, shape index: {}]
  %s1 = inlined_call_operand.vmem [shape: f32[2048,8], index: 1, kind: input, shape index: {}]
  %s2 = inlined_call_operand.vmem [shape: f32[8,2048], index: 2, kind: input, shape index: {}]
  %s3 = inlined_call_operand.vmem [shape: f32[8,2], index: 3, kind: input, shape index: {}]
  %s4 = inlined_call_operand.vmem [shape: f32[2,8], index: 4, kind: input, shape index: {}]
  %s5 = inlined_call_operand.hbm [shape: f32[16,2048], index: 5, kind: output, shape index: {}]
  %s6 = sld [smem:[#allocation0]]
  $region30: #{tpu_custom_call.1} parent=0
    _
  %s8 = ssub.s32 1, %s6
  %s9 = scalar_select 0, %s8, %s6
  $region1: #{tpu_custom_call.1} parent=0
    #allocation2 [shape = 'u8[131072]{0}', space=vmem, size = 0x20000, scoped, tag = 'output window, operand 0, single buffered']
    #allocation3 [shape = 's32[1]{0}', space=sflag, size = 0x4, scoped, tag = 'scoped memory for tpu_custom_call.1']
    %10 = vsyncpa [#allocation3], 0
    // Predicated region
    $region2: #{tpu_custom_call.1} parent=1 // pred_check
      _
    $region3: #{tpu_custom_call.1} parent=1 // pred_check_branch
      %12 = sbr.rel (0) target = $region5
    $region4: #{tpu_custom_call.1} parent=1 // pred_region
      _
    $region5: #{tpu_custom_call.1} parent=1 // pred_fallthru
      _
    // Predicated region
    $region6: #{tpu_custom_call.1} parent=1 // pred_check
      _
    $region7: #{tpu_custom_call.1} parent=1 // pred_check_branch
      %14 = sbr.rel (0) target = $region9
    $region8: #{tpu_custom_call.1} parent=1 // pred_region
      _
    $region9: #{tpu_custom_call.1} parent=1 // pred_fallthru
      _
    // Predicated region
    $region10: #{tpu_custom_call.1} parent=1 // pred_check
      _
    $region11: #{tpu_custom_call.1} parent=1 // pred_check_branch
      %16 = sbr.rel (0) target = $region13
    $region12: #{tpu_custom_call.1} parent=1 // pred_region
      _
    $region13: #{tpu_custom_call.1} parent=1 // pred_fallthru
      _
    // Predicated region
    $region14: #{tpu_custom_call.1} parent=1 // pred_check
      _
    $region15: #{tpu_custom_call.1} parent=1 // pred_check_branch
      %18 = sbr.rel (0) target = $region17
    $region16: #{tpu_custom_call.1} parent=1 // pred_region
      _
    $region17: #{tpu_custom_call.1} parent=1 // pred_fallthru
      _
    // Predicated region
    $region18: #{tpu_custom_call.1} parent=1 // pred_check
      _
    $region19: #{tpu_custom_call.1} parent=1 // pred_check_branch
      %20 = sbr.rel (0) target = $region21
    $region20: #{tpu_custom_call.1} parent=1 // pred_region
      _
    $region21: #{tpu_custom_call.1} parent=1 // pred_fallthru
      _
    %v21 = vld [vmem:[%s0] sm:$0xff]
    %v22 = vld [vmem:[%s0 + $0x8] sm:$0xff]
    %v23 = vld [vmem:[%s0 + $0x10] sm:$0xff]
    %v24 = vld [vmem:[%s0 + $0x18] sm:$0xff]
    %v25 = vld [vmem:[%s0 + $0x20] sm:$0xff]
    %v26 = vld [vmem:[%s0 + $0x28] sm:$0xff]
    %v27 = vld [vmem:[%s0 + $0x30] sm:$0xff]
    %v28 = vld [vmem:[%s0 + $0x38] sm:$0xff]
    %v29 = vld [vmem:[%s0 + $0x40] sm:$0xff]
    %v30 = vld [vmem:[%s0 + $0x48] sm:$0xff]
    %v31 = vld [vmem:[%s0 + $0x50] sm:$0xff]
    %v32 = vld [vmem:[%s0 + $0x58] sm:$0xff]
    %v33 = vld [vmem:[%s0 + $0x60] sm:$0xff]
    %v34 = vld [vmem:[%s0 + $0x68] sm:$0xff]
    %v35 = vld [vmem:[%s0 + $0x70] sm:$0xff]
    %v36 = vld [vmem:[%s0 + $0x78] sm:$0xff]
    %v37 = vld [vmem:[%s0 + $0x80] sm:$0xff]
    %v38 = vld [vmem:[%s0 + $0x88] sm:$0xff]
    %v39 = vld [vmem:[%s0 + $0x90] sm:$0xff]
    %v40 = vld [vmem:[%s0 + $0x98] sm:$0xff]
    %v41 = vld [vmem:[%s0 + $0xa0] sm:$0xff]
    %v42 = vld [vmem:[%s0 + $0xa8] sm:$0xff]
    %v43 = vld [vmem:[%s0 + $0xb0] sm:$0xff]
    %v44 = vld [vmem:[%s0 + $0xb8] sm:$0xff]
    %v45 = vld [vmem:[%s0 + $0xc0] sm:$0xff]
    %v46 = vld [vmem:[%s0 + $0xc8] sm:$0xff]
    %v47 = vld [vmem:[%s0 + $0xd0] sm:$0xff]
    %v48 = vld [vmem:[%s0 + $0xd8] sm:$0xff]
    %v49 = vld [vmem:[%s0 + $0xe0] sm:$0xff]
    %v50 = vld [vmem:[%s0 + $0xe8] sm:$0xff]
    %v51 = vld [vmem:[%s0 + $0xf0] sm:$0xff]
    %v52 = vld [vmem:[%s0 + $0xf8] sm:$0xff]
    %v53 = vld [vmem:[%s1] sm:$0xff]
    %v54 = vld [vmem:[%s1 + $0x8] sm:$0xff]
    %v55 = vld [vmem:[%s1 + $0x10] sm:$0xff]
    %v56 = vld [vmem:[%s1 + $0x18] sm:$0xff]
    %v57 = vld [vmem:[%s1 + $0x20] sm:$0xff]
    %v58 = vld [vmem:[%s1 + $0x28] sm:$0xff]
    %v59 = vld [vmem:[%s1 + $0x30] sm:$0xff]
    %v60 = vld [vmem:[%s1 + $0x38] sm:$0xff]
    %v61 = vld [vmem:[%s1 + $0x40] sm:$0xff]
    %v62 = vld [vmem:[%s1 + $0x48] sm:$0xff]
    %v63 = vld [vmem:[%s1 + $0x50] sm:$0xff]
    %v64 = vld [vmem:[%s1 + $0x58] sm:$0xff]
    %v65 = vld [vmem:[%s1 + $0x60] sm:$0xff]
    %v66 = vld [vmem:[%s1 + $0x68] sm:$0xff]
    %v67 = vld [vmem:[%s1 + $0x70] sm:$0xff]
    %v68 = vld [vmem:[%s1 + $0x78] sm:$0xff]
    %v69 = vld [vmem:[%s1 + $0x80] sm:$0xff]
    %v70 = vld [vmem:[%s1 + $0x88] sm:$0xff]
    %v71 = vld [vmem:[%s1 + $0x90] sm:$0xff]
    %v72 = vld [vmem:[%s1 + $0x98] sm:$0xff]
    %v73 = vld [vmem:[%s1 + $0xa0] sm:$0xff]
    %v74 = vld [vmem:[%s1 + $0xa8] sm:$0xff]
    %v75 = vld [vmem:[%s1 + $0xb0] sm:$0xff]
    %v76 = vld [vmem:[%s1 + $0xb8] sm:$0xff]
    %v77 = vld [vmem:[%s1 + $0xc0] sm:$0xff]
    %v78 = vld [vmem:[%s1 + $0xc8] sm:$0xff]
    %v79 = vld [vmem:[%s1 + $0xd0] sm:$0xff]
    %v80 = vld [vmem:[%s1 + $0xd8] sm:$0xff]
    %v81 = vld [vmem:[%s1 + $0xe0] sm:$0xff]
    %v82 = vld [vmem:[%s1 + $0xe8] sm:$0xff]
    %v83 = vld [vmem:[%s1 + $0xf0] sm:$0xff]
    %v84 = vld [vmem:[%s1 + $0xf8] sm:$0xff]
    %v85 = vld [vmem:[%s1 + $0x100] sm:$0xff]
    %v86 = vld [vmem:[%s1 + $0x108] sm:$0xff]
    %v87 = vld [vmem:[%s1 + $0x110] sm:$0xff]
    %v88 = vld [vmem:[%s1 + $0x118] sm:$0xff]
    %v89 = vld [vmem:[%s1 + $0x120] sm:$0xff]
    %v90 = vld [vmem:[%s1 + $0x128] sm:$0xff]
    %v91 = vld [vmem:[%s1 + $0x130] sm:$0xff]
    %v92 = vld [vmem:[%s1 + $0x138] sm:$0xff]
    %v93 = vld [vmem:[%s1 + $0x140] sm:$0xff]
    %v94 = vld [vmem:[%s1 + $0x148] sm:$0xff]
    %v95 = vld [vmem:[%s1 + $0x150] sm:$0xff]
    %v96 = vld [vmem:[%s1 + $0x158] sm:$0xff]
    %v97 = vld [vmem:[%s1 + $0x160] sm:$0xff]
    %v98 = vld [vmem:[%s1 + $0x168] sm:$0xff]
    %v99 = vld [vmem:[%s1 + $0x170] sm:$0xff]
    %v100 = vld [vmem:[%s1 + $0x178] sm:$0xff]
    %v101 = vld [vmem:[%s1 + $0x180] sm:$0xff]
    %v102 = vld [vmem:[%s1 + $0x188] sm:$0xff]
    %v103 = vld [vmem:[%s1 + $0x190] sm:$0xff]
    %v104 = vld [vmem:[%s1 + $0x198] sm:$0xff]
    %v105 = vld [vmem:[%s1 + $0x1a0] sm:$0xff]
    %v106 = vld [vmem:[%s1 + $0x1a8] sm:$0xff]
    %v107 = vld [vmem:[%s1 + $0x1b0] sm:$0xff]
    %v108 = vld [vmem:[%s1 + $0x1b8] sm:$0xff]
    %v109 = vld [vmem:[%s1 + $0x1c0] sm:$0xff]
    %v110 = vld [vmem:[%s1 + $0x1c8] sm:$0xff]
    %v111 = vld [vmem:[%s1 + $0x1d0] sm:$0xff]
    %v112 = vld [vmem:[%s1 + $0x1d8] sm:$0xff]
    %v113 = vld [vmem:[%s1 + $0x1e0] sm:$0xff]
    %v114 = vld [vmem:[%s1 + $0x1e8] sm:$0xff]
    %v115 = vld [vmem:[%s1 + $0x1f0] sm:$0xff]
    %v116 = vld [vmem:[%s1 + $0x1f8] sm:$0xff]
    %v117 = vld [vmem:[%s1 + $0x200] sm:$0xff]
    %v118 = vld [vmem:[%s1 + $0x208] sm:$0xff]
    %v119 = vld [vmem:[%s1 + $0x210] sm:$0xff]
    %v120 = vld [vmem:[%s1 + $0x218] sm:$0xff]
    %v121 = vld [vmem:[%s1 + $0x220] sm:$0xff]
    %v122 = vld [vmem:[%s1 + $0x228] sm:$0xff]
    %v123 = vld [vmem:[%s1 + $0x230] sm:$0xff]
    %v124 = vld [vmem:[%s1 + $0x238] sm:$0xff]
    %v125 = vld [vmem:[%s1 + $0x240] sm:$0xff]
    %v126 = vld [vmem:[%s1 + $0x248] sm:$0xff]
    %v127 = vld [vmem:[%s1 + $0x250] sm:$0xff]
    %v128 = vld [vmem:[%s1 + $0x258] sm:$0xff]
    %v129 = vld [vmem:[%s1 + $0x260] sm:$0xff]
    %v130 = vld [vmem:[%s1 + $0x268] sm:$0xff]
    %v131 = vld [vmem:[%s1 + $0x270] sm:$0xff]
    %v132 = vld [vmem:[%s1 + $0x278] sm:$0xff]
    %v133 = vld [vmem:[%s1 + $0x280] sm:$0xff]
    %v134 = vld [vmem:[%s1 + $0x288] sm:$0xff]
    %v135 = vld [vmem:[%s1 + $0x290] sm:$0xff]
    %v136 = vld [vmem:[%s1 + $0x298] sm:$0xff]
    %v137 = vld [vmem:[%s1 + $0x2a0] sm:$0xff]
    %v138 = vld [vmem:[%s1 + $0x2a8] sm:$0xff]
    %v139 = vld [vmem:[%s1 + $0x2b0] sm:$0xff]
    %v140 = vld [vmem:[%s1 + $0x2b8] sm:$0xff]
    %v141 = vld [vmem:[%s1 + $0x2c0] sm:$0xff]
    %v142 = vld [vmem:[%s1 + $0x2c8] sm:$0xff]
    %v143 = vld [vmem:[%s1 + $0x2d0] sm:$0xff]
    %v144 = vld [vmem:[%s1 + $0x2d8] sm:$0xff]
    %v145 = vld [vmem:[%s1 + $0x2e0] sm:$0xff]
    %v146 = vld [vmem:[%s1 + $0x2e8] sm:$0xff]
    %v147 = vld [vmem:[%s1 + $0x2f0] sm:$0xff]
    %v148 = vld [vmem:[%s1 + $0x2f8] sm:$0xff]
    %v149 = vld [vmem:[%s1 + $0x300] sm:$0xff]
    %v150 = vld [vmem:[%s1 + $0x308] sm:$0xff]
    %v151 = vld [vmem:[%s1 + $0x310] sm:$0xff]
    %v152 = vld [vmem:[%s1 + $0x318] sm:$0xff]
    %v153 = vld [vmem:[%s1 + $0x320] sm:$0xff]
    %v154 = vld [vmem:[%s1 + $0x328] sm:$0xff]
    %v155 = vld [vmem:[%s1 + $0x330] sm:$0xff]
    %v156 = vld [vmem:[%s1 + $0x338] sm:$0xff]
    %v157 = vld [vmem:[%s1 + $0x340] sm:$0xff]
    %v158 = vld [vmem:[%s1 + $0x348] sm:$0xff]
    %v159 = vld [vmem:[%s1 + $0x350] sm:$0xff]
    %v160 = vld [vmem:[%s1 + $0x358] sm:$0xff]
    %v161 = vld [vmem:[%s1 + $0x360] sm:$0xff]
    %v162 = vld [vmem:[%s1 + $0x368] sm:$0xff]
    %v163 = vld [vmem:[%s1 + $0x370] sm:$0xff]
    %v164 = vld [vmem:[%s1 + $0x378] sm:$0xff]
    %v165 = vld [vmem:[%s1 + $0x380] sm:$0xff]
    %v166 = vld [vmem:[%s1 + $0x388] sm:$0xff]
    %v167 = vld [vmem:[%s1 + $0x390] sm:$0xff]
    %v168 = vld [vmem:[%s1 + $0x398] sm:$0xff]
    %v169 = vld [vmem:[%s1 + $0x3a0] sm:$0xff]
    %v170 = vld [vmem:[%s1 + $0x3a8] sm:$0xff]
    %v171 = vld [vmem:[%s1 + $0x3b0] sm:$0xff]
    %v172 = vld [vmem:[%s1 + $0x3b8] sm:$0xff]
    %v173 = vld [vmem:[%s1 + $0x3c0] sm:$0xff]
    %v174 = vld [vmem:[%s1 + $0x3c8] sm:$0xff]
    %v175 = vld [vmem:[%s1 + $0x3d0] sm:$0xff]
    %v176 = vld [vmem:[%s1 + $0x3d8] sm:$0xff]
    %v177 = vld [vmem:[%s1 + $0x3e0] sm:$0xff]
    %v178 = vld [vmem:[%s1 + $0x3e8] sm:$0xff]
    %v179 = vld [vmem:[%s1 + $0x3f0] sm:$0xff]
    %v180 = vld [vmem:[%s1 + $0x3f8] sm:$0xff]
    %v181 = vld [vmem:[%s1 + $0x400] sm:$0xff]
    %v182 = vld [vmem:[%s1 + $0x408] sm:$0xff]
    %v183 = vld [vmem:[%s1 + $0x410] sm:$0xff]
    %v184 = vld [vmem:[%s1 + $0x418] sm:$0xff]
    %v185 = vld [vmem:[%s1 + $0x420] sm:$0xff]
    %v186 = vld [vmem:[%s1 + $0x428] sm:$0xff]
    %v187 = vld [vmem:[%s1 + $0x430] sm:$0xff]
    %v188 = vld [vmem:[%s1 + $0x438] sm:$0xff]
    %v189 = vld [vmem:[%s1 + $0x440] sm:$0xff]
    %v190 = vld [vmem:[%s1 + $0x448] sm:$0xff]
    %v191 = vld [vmem:[%s1 + $0x450] sm:$0xff]
    %v192 = vld [vmem:[%s1 + $0x458] sm:$0xff]
    %v193 = vld [vmem:[%s1 + $0x460] sm:$0xff]
    %v194 = vld [vmem:[%s1 + $0x468] sm:$0xff]
    %v195 = vld [vmem:[%s1 + $0x470] sm:$0xff]
    %v196 = vld [vmem:[%s1 + $0x478] sm:$0xff]
    %v197 = vld [vmem:[%s1 + $0x480] sm:$0xff]
    %v198 = vld [vmem:[%s1 + $0x488] sm:$0xff]
    %v199 = vld [vmem:[%s1 + $0x490] sm:$0xff]
    %v200 = vld [vmem:[%s1 + $0x498] sm:$0xff]
    %v201 = vld [vmem:[%s1 + $0x4a0] sm:$0xff]
    %v202 = vld [vmem:[%s1 + $0x4a8] sm:$0xff]
    %v203 = vld [vmem:[%s1 + $0x4b0] sm:$0xff]
    %v204 = vld [vmem:[%s1 + $0x4b8] sm:$0xff]
    %v205 = vld [vmem:[%s1 + $0x4c0] sm:$0xff]
    %v206 = vld [vmem:[%s1 + $0x4c8] sm:$0xff]
    %v207 = vld [vmem:[%s1 + $0x4d0] sm:$0xff]
    %v208 = vld [vmem:[%s1 + $0x4d8] sm:$0xff]
    %v209 = vld [vmem:[%s1 + $0x4e0] sm:$0xff]
    %v210 = vld [vmem:[%s1 + $0x4e8] sm:$0xff]
    %v211 = vld [vmem:[%s1 + $0x4f0] sm:$0xff]
    %v212 = vld [vmem:[%s1 + $0x4f8] sm:$0xff]
    %v213 = vld [vmem:[%s1 + $0x500] sm:$0xff]
    %v214 = vld [vmem:[%s1 + $0x508] sm:$0xff]
    %v215 = vld [vmem:[%s1 + $0x510] sm:$0xff]
    %v216 = vld [vmem:[%s1 + $0x518] sm:$0xff]
    %v217 = vld [vmem:[%s1 + $0x520] sm:$0xff]
    %v218 = vld [vmem:[%s1 + $0x528] sm:$0xff]
    %v219 = vld [vmem:[%s1 + $0x530] sm:$0xff]
    %v220 = vld [vmem:[%s1 + $0x538] sm:$0xff]
    %v221 = vld [vmem:[%s1 + $0x540] sm:$0xff]
    %v222 = vld [vmem:[%s1 + $0x548] sm:$0xff]
    %v223 = vld [vmem:[%s1 + $0x550] sm:$0xff]
    %v224 = vld [vmem:[%s1 + $0x558] sm:$0xff]
    %v225 = vld [vmem:[%s1 + $0x560] sm:$0xff]
    %v226 = vld [vmem:[%s1 + $0x568] sm:$0xff]
    %v227 = vld [vmem:[%s1 + $0x570] sm:$0xff]
    %v228 = vld [vmem:[%s1 + $0x578] sm:$0xff]
    %v229 = vld [vmem:[%s1 + $0x580] sm:$0xff]
    %v230 = vld [vmem:[%s1 + $0x588] sm:$0xff]
    %v231 = vld [vmem:[%s1 + $0x590] sm:$0xff]
    %v232 = vld [vmem:[%s1 + $0x598] sm:$0xff]
    %v233 = vld [vmem:[%s1 + $0x5a0] sm:$0xff]
    %v234 = vld [vmem:[%s1 + $0x5a8] sm:$0xff]
    %v235 = vld [vmem:[%s1 + $0x5b0] sm:$0xff]
    %v236 = vld [vmem:[%s1 + $0x5b8] sm:$0xff]
    %v237 = vld [vmem:[%s1 + $0x5c0] sm:$0xff]
    %v238 = vld [vmem:[%s1 + $0x5c8] sm:$0xff]
    %v239 = vld [vmem:[%s1 + $0x5d0] sm:$0xff]
    %v240 = vld [vmem:[%s1 + $0x5d8] sm:$0xff]
    %v241 = vld [vmem:[%s1 + $0x5e0] sm:$0xff]
    %v242 = vld [vmem:[%s1 + $0x5e8] sm:$0xff]
    %v243 = vld [vmem:[%s1 + $0x5f0] sm:$0xff]
    %v244 = vld [vmem:[%s1 + $0x5f8] sm:$0xff]
    %v245 = vld [vmem:[%s1 + $0x600] sm:$0xff]
    %v246 = vld [vmem:[%s1 + $0x608] sm:$0xff]
    %v247 = vld [vmem:[%s1 + $0x610] sm:$0xff]
    %v248 = vld [vmem:[%s1 + $0x618] sm:$0xff]
    %v249 = vld [vmem:[%s1 + $0x620] sm:$0xff]
    %v250 = vld [vmem:[%s1 + $0x628] sm:$0xff]
    %v251 = vld [vmem:[%s1 + $0x630] sm:$0xff]
    %v252 = vld [vmem:[%s1 + $0x638] sm:$0xff]
    %v253 = vld [vmem:[%s1 + $0x640] sm:$0xff]
    %v254 = vld [vmem:[%s1 + $0x648] sm:$0xff]
    %v255 = vld [vmem:[%s1 + $0x650] sm:$0xff]
    %v256 = vld [vmem:[%s1 + $0x658] sm:$0xff]
    %v257 = vld [vmem:[%s1 + $0x660] sm:$0xff]
    %v258 = vld [vmem:[%s1 + $0x668] sm:$0xff]
    %v259 = vld [vmem:[%s1 + $0x670] sm:$0xff]
    %v260 = vld [vmem:[%s1 + $0x678] sm:$0xff]
    %v261 = vld [vmem:[%s1 + $0x680] sm:$0xff]
    %v262 = vld [vmem:[%s1 + $0x688] sm:$0xff]
    %v263 = vld [vmem:[%s1 + $0x690] sm:$0xff]
    %v264 = vld [vmem:[%s1 + $0x698] sm:$0xff]
    %v265 = vld [vmem:[%s1 + $0x6a0] sm:$0xff]
    %v266 = vld [vmem:[%s1 + $0x6a8] sm:$0xff]
    %v267 = vld [vmem:[%s1 + $0x6b0] sm:$0xff]
    %v268 = vld [vmem:[%s1 + $0x6b8] sm:$0xff]
    %v269 = vld [vmem:[%s1 + $0x6c0] sm:$0xff]
    %v270 = vld [vmem:[%s1 + $0x6c8] sm:$0xff]
    %v271 = vld [vmem:[%s1 + $0x6d0] sm:$0xff]
    %v272 = vld [vmem:[%s1 + $0x6d8] sm:$0xff]
    %v273 = vld [vmem:[%s1 + $0x6e0] sm:$0xff]
    %v274 = vld [vmem:[%s1 + $0x6e8] sm:$0xff]
    %v275 = vld [vmem:[%s1 + $0x6f0] sm:$0xff]
    %v276 = vld [vmem:[%s1 + $0x6f8] sm:$0xff]
    %v277 = vld [vmem:[%s1 + $0x700] sm:$0xff]
    %v278 = vld [vmem:[%s1 + $0x708] sm:$0xff]
    %v279 = vld [vmem:[%s1 + $0x710] sm:$0xff]
    %v280 = vld [vmem:[%s1 + $0x718] sm:$0xff]
    %v281 = vld [vmem:[%s1 + $0x720] sm:$0xff]
    %v282 = vld [vmem:[%s1 + $0x728] sm:$0xff]
    %v283 = vld [vmem:[%s1 + $0x730] sm:$0xff]
    %v284 = vld [vmem:[%s1 + $0x738] sm:$0xff]
    %v285 = vld [vmem:[%s1 + $0x740] sm:$0xff]
    %v286 = vld [vmem:[%s1 + $0x748] sm:$0xff]
    %v287 = vld [vmem:[%s1 + $0x750] sm:$0xff]
    %v288 = vld [vmem:[%s1 + $0x758] sm:$0xff]
    %v289 = vld [vmem:[%s1 + $0x760] sm:$0xff]
    %v290 = vld [vmem:[%s1 + $0x768] sm:$0xff]
    %v291 = vld [vmem:[%s1 + $0x770] sm:$0xff]
    %v292 = vld [vmem:[%s1 + $0x778] sm:$0xff]
    %v293 = vld [vmem:[%s1 + $0x780] sm:$0xff]
    %v294 = vld [vmem:[%s1 + $0x788] sm:$0xff]
    %v295 = vld [vmem:[%s1 + $0x790] sm:$0xff]
    %v296 = vld [vmem:[%s1 + $0x798] sm:$0xff]
    %v297 = vld [vmem:[%s1 + $0x7a0] sm:$0xff]
    %v298 = vld [vmem:[%s1 + $0x7a8] sm:$0xff]
    %v299 = vld [vmem:[%s1 + $0x7b0] sm:$0xff]
    %v300 = vld [vmem:[%s1 + $0x7b8] sm:$0xff]
    %v301 = vld [vmem:[%s1 + $0x7c0] sm:$0xff]
    %v302 = vld [vmem:[%s1 + $0x7c8] sm:$0xff]
    %v303 = vld [vmem:[%s1 + $0x7d0] sm:$0xff]
    %v304 = vld [vmem:[%s1 + $0x7d8] sm:$0xff]
    %v305 = vld [vmem:[%s1 + $0x7e0] sm:$0xff]
    %v306 = vld [vmem:[%s1 + $0x7e8] sm:$0xff]
    %v307 = vld [vmem:[%s1 + $0x7f0] sm:$0xff]
    %v308 = vld [vmem:[%s1 + $0x7f8] sm:$0xff]
    %309 = vmatpush.msra.mxu0 %v68
    %310 = vmatpush.msra.mxu0 %v67
    %311 = vmatpush.msra.mxu0 %v66
    %312 = vmatpush.msra.mxu0 %v65
    %313 = vmatpush.msra.mxu0 %v64
    %314 = vmatpush.msra.mxu0 %v63
    %315 = vmatpush.msra.mxu0 %v62
    %316 = vmatpush.msra.mxu0 %v61
    %317 = vmatpush.msra.mxu0 %v60
    %318 = vmatpush.msra.mxu0 %v59
    %319 = vmatpush.msra.mxu0 %v58
    %320 = vmatpush.msra.mxu0 %v57
    %321 = vmatpush.msra.mxu0 %v56
    %322 = vmatpush.msra.mxu0 %v55
    %323 = vmatpush.msra.mxu0 %v54
    %324 = vmatpush.msra.mxu0 %v53
    %325 = vmatmul.f32.gmra.mxu0 %v21
    %v326 = vpop.f32.mrf.mxu0
    %v327 = vadd.f32 0.0, %v326
    %328 = vmatmul.f32.gmra.mxu0 %v37
    %v329 = vpop.f32.mrf.mxu0
    %v330 = vadd.f32 0.0, %v329
    %331 = vdwg.mxu0
    %332 = vmatpush.msra.mxu0 %v84
    %333 = vmatpush.msra.mxu0 %v83
    %334 = vmatpush.msra.mxu0 %v82
    %335 = vmatpush.msra.mxu0 %v81
    %336 = vmatpush.msra.mxu0 %v80
    %337 = vmatpush.msra.mxu0 %v79
    %338 = vmatpush.msra.mxu0 %v78
    %339 = vmatpush.msra.mxu0 %v77
    %340 = vmatpush.msra.mxu0 %v76
    %341 = vmatpush.msra.mxu0 %v75
    %342 = vmatpush.msra.mxu0 %v74
    %343 = vmatpush.msra.mxu0 %v73
    %344 = vmatpush.msra.mxu0 %v72
    %345 = vmatpush.msra.mxu0 %v71
    %346 = vmatpush.msra.mxu0 %v70
    %347 = vmatpush.msra.mxu0 %v69
    %348 = vmatmul.f32.gmra.mxu0 %v22
    %v349 = vpop.f32.mrf.mxu0
    %v350 = vadd.f32 %v327, %v349
    %351 = vmatmul.f32.gmra.mxu0 %v38
    %v352 = vpop.f32.mrf.mxu0
    %v353 = vadd.f32 %v330, %v352
    %354 = vdwg.mxu0
    %355 = vmatpush.msra.mxu0 %v100
    %356 = vmatpush.msra.mxu0 %v99
    %357 = vmatpush.msra.mxu0 %v98
    %358 = vmatpush.msra.mxu0 %v97
    %359 = vmatpush.msra.mxu0 %v96
    %360 = vmatpush.msra.mxu0 %v95
    %361 = vmatpush.msra.mxu0 %v94
    %362 = vmatpush.msra.mxu0 %v93
    %363 = vmatpush.msra.mxu0 %v92
    %364 = vmatpush.msra.mxu0 %v91
    %365 = vmatpush.msra.mxu0 %v90
    %366 = vmatpush.msra.mxu0 %v89
    %367 = vmatpush.msra.mxu0 %v88
    %368 = vmatpush.msra.mxu0 %v87
    %369 = vmatpush.msra.mxu0 %v86
    %370 = vmatpush.msra.mxu0 %v85
    %371 = vmatmul.f32.gmra.mxu0 %v23
    %v372 = vpop.f32.mrf.mxu0
    %v373 = vadd.f32 %v350, %v372
    %374 = vmatmul.f32.gmra.mxu0 %v39
    %v375 = vpop.f32.mrf.mxu0
    %v376 = vadd.f32 %v353, %v375
    %377 = vdwg.mxu0
    %378 = vmatpush.msra.mxu0 %v116
    %379 = vmatpush.msra.mxu0 %v115
    %380 = vmatpush.msra.mxu0 %v114
    %381 = vmatpush.msra.mxu0 %v113
    %382 = vmatpush.msra.mxu0 %v112
    %383 = vmatpush.msra.mxu0 %v111
    %384 = vmatpush.msra.mxu0 %v110
    %385 = vmatpush.msra.mxu0 %v109
    %386 = vmatpush.msra.mxu0 %v108
    %387 = vmatpush.msra.mxu0 %v107
    %388 = vmatpush.msra.mxu0 %v106
    %389 = vmatpush.msra.mxu0 %v105
    %390 = vmatpush.msra.mxu0 %v104
    %391 = vmatpush.msra.mxu0 %v103
    %392 = vmatpush.msra.mxu0 %v102
    %393 = vmatpush.msra.mxu0 %v101
    %394 = vmatmul.f32.gmra.mxu0 %v24
    %v395 = vpop.f32.mrf.mxu0
    %v396 = vadd.f32 %v373, %v395
    %397 = vmatmul.f32.gmra.mxu0 %v40
    %v398 = vpop.f32.mrf.mxu0
    %v399 = vadd.f32 %v376, %v398
    %400 = vdwg.mxu0
    %401 = vmatpush.msra.mxu0 %v132
    %402 = vmatpush.msra.mxu0 %v131
    %403 = vmatpush.msra.mxu0 %v130
    %404 = vmatpush.msra.mxu0 %v129
    %405 = vmatpush.msra.mxu0 %v128
    %406 = vmatpush.msra.mxu0 %v127
    %407 = vmatpush.msra.mxu0 %v126
    %408 = vmatpush.msra.mxu0 %v125
    %409 = vmatpush.msra.mxu0 %v124
    %410 = vmatpush.msra.mxu0 %v123
    %411 = vmatpush.msra.mxu0 %v122
    %412 = vmatpush.msra.mxu0 %v121
    %413 = vmatpush.msra.mxu0 %v120
    %414 = vmatpush.msra.mxu0 %v119
    %415 = vmatpush.msra.mxu0 %v118
    %416 = vmatpush.msra.mxu0 %v117
    %417 = vmatmul.f32.gmra.mxu0 %v25
    %v418 = vpop.f32.mrf.mxu0
    %v419 = vadd.f32 %v396, %v418
    %420 = vmatmul.f32.gmra.mxu0 %v41
    %v421 = vpop.f32.mrf.mxu0
    %v422 = vadd.f32 %v399, %v421
    %423 = vdwg.mxu0
    %424 = vmatpush.msra.mxu0 %v148
    %425 = vmatpush.msra.mxu0 %v147
    %426 = vmatpush.msra.mxu0 %v146
    %427 = vmatpush.msra.mxu0 %v145
    %428 = vmatpush.msra.mxu0 %v144
    %429 = vmatpush.msra.mxu0 %v143
    %430 = vmatpush.msra.mxu0 %v142
    %431 = vmatpush.msra.mxu0 %v141
    %432 = vmatpush.msra.mxu0 %v140
    %433 = vmatpush.msra.mxu0 %v139
    %434 = vmatpush.msra.mxu0 %v138
    %435 = vmatpush.msra.mxu0 %v137
    %436 = vmatpush.msra.mxu0 %v136
    %437 = vmatpush.msra.mxu0 %v135
    %438 = vmatpush.msra.mxu0 %v134
    %439 = vmatpush.msra.mxu0 %v133
    %440 = vmatmul.f32.gmra.mxu0 %v26
    %v441 = vpop.f32.mrf.mxu0
    %v442 = vadd.f32 %v419, %v441
    %443 = vmatmul.f32.gmra.mxu0 %v42
    %v444 = vpop.f32.mrf.mxu0
    %v445 = vadd.f32 %v422, %v444
    %446 = vdwg.mxu0
    %447 = vmatpush.msra.mxu0 %v164
    %448 = vmatpush.msra.mxu0 %v163
    %449 = vmatpush.msra.mxu0 %v162
    %450 = vmatpush.msra.mxu0 %v161
    %451 = vmatpush.msra.mxu0 %v160
    %452 = vmatpush.msra.mxu0 %v159
    %453 = vmatpush.msra.mxu0 %v158
    %454 = vmatpush.msra.mxu0 %v157
    %455 = vmatpush.msra.mxu0 %v156
    %456 = vmatpush.msra.mxu0 %v155
    %457 = vmatpush.msra.mxu0 %v154
    %458 = vmatpush.msra.mxu0 %v153
    %459 = vmatpush.msra.mxu0 %v152
    %460 = vmatpush.msra.mxu0 %v151
    %461 = vmatpush.msra.mxu0 %v150
    %462 = vmatpush.msra.mxu0 %v149
    %463 = vmatmul.f32.gmra.mxu0 %v27
    %v464 = vpop.f32.mrf.mxu0
    %v465 = vadd.f32 %v442, %v464
    %466 = vmatmul.f32.gmra.mxu0 %v43
    %v467 = vpop.f32.mrf.mxu0
    %v468 = vadd.f32 %v445, %v467
    %469 = vdwg.mxu0
    %470 = vmatpush.msra.mxu0 %v180
    %471 = vmatpush.msra.mxu0 %v179
    %472 = vmatpush.msra.mxu0 %v178
    %473 = vmatpush.msra.mxu0 %v177
    %474 = vmatpush.msra.mxu0 %v176
    %475 = vmatpush.msra.mxu0 %v175
    %476 = vmatpush.msra.mxu0 %v174
    %477 = vmatpush.msra.mxu0 %v173
    %478 = vmatpush.msra.mxu0 %v172
    %479 = vmatpush.msra.mxu0 %v171
    %480 = vmatpush.msra.mxu0 %v170
    %481 = vmatpush.msra.mxu0 %v169
    %482 = vmatpush.msra.mxu0 %v168
    %483 = vmatpush.msra.mxu0 %v167
    %484 = vmatpush.msra.mxu0 %v166
    %485 = vmatpush.msra.mxu0 %v165
    %486 = vmatmul.f32.gmra.mxu0 %v28
    %v487 = vpop.f32.mrf.mxu0
    %v488 = vadd.f32 %v465, %v487
    %489 = vmatmul.f32.gmra.mxu0 %v44
    %v490 = vpop.f32.mrf.mxu0
    %v491 = vadd.f32 %v468, %v490
    %492 = vdwg.mxu0
    %493 = vmatpush.msra.mxu0 %v196
    %494 = vmatpush.msra.mxu0 %v195
    %495 = vmatpush.msra.mxu0 %v194
    %496 = vmatpush.msra.mxu0 %v193
    %497 = vmatpush.msra.mxu0 %v192
    %498 = vmatpush.msra.mxu0 %v191
    %499 = vmatpush.msra.mxu0 %v190
    %500 = vmatpush.msra.mxu0 %v189
    %501 = vmatpush.msra.mxu0 %v188
    %502 = vmatpush.msra.mxu0 %v187
    %503 = vmatpush.msra.mxu0 %v186
    %504 = vmatpush.msra.mxu0 %v185
    %505 = vmatpush.msra.mxu0 %v184
    %506 = vmatpush.msra.mxu0 %v183
    %507 = vmatpush.msra.mxu0 %v182
    %508 = vmatpush.msra.mxu0 %v181
    %509 = vmatmul.f32.gmra.mxu0 %v29
    %v510 = vpop.f32.mrf.mxu0
    %v511 = vadd.f32 %v488, %v510
    %512 = vmatmul.f32.gmra.mxu0 %v45
    %v513 = vpop.f32.mrf.mxu0
    %v514 = vadd.f32 %v491, %v513
    %515 = vdwg.mxu0
    %516 = vmatpush.msra.mxu0 %v212
    %517 = vmatpush.msra.mxu0 %v211
    %518 = vmatpush.msra.mxu0 %v210
    %519 = vmatpush.msra.mxu0 %v209
    %520 = vmatpush.msra.mxu0 %v208
    %521 = vmatpush.msra.mxu0 %v207
    %522 = vmatpush.msra.mxu0 %v206
    %523 = vmatpush.msra.mxu0 %v205
    %524 = vmatpush.msra.mxu0 %v204
    %525 = vmatpush.msra.mxu0 %v203
    %526 = vmatpush.msra.mxu0 %v202
    %527 = vmatpush.msra.mxu0 %v201
    %528 = vmatpush.msra.mxu0 %v200
    %529 = vmatpush.msra.mxu0 %v199
    %530 = vmatpush.msra.mxu0 %v198
    %531 = vmatpush.msra.mxu0 %v197
    %532 = vmatmul.f32.gmra.mxu0 %v30
    %v533 = vpop.f32.mrf.mxu0
    %v534 = vadd.f32 %v511, %v533
    %535 = vmatmul.f32.gmra.mxu0 %v46
    %v536 = vpop.f32.mrf.mxu0
    %v537 = vadd.f32 %v514, %v536
    %538 = vdwg.mxu0
    %539 = vmatpush.msra.mxu0 %v228
    %540 = vmatpush.msra.mxu0 %v227
    %541 = vmatpush.msra.mxu0 %v226
    %542 = vmatpush.msra.mxu0 %v225
    %543 = vmatpush.msra.mxu0 %v224
    %544 = vmatpush.msra.mxu0 %v223
    %545 = vmatpush.msra.mxu0 %v222
    %546 = vmatpush.msra.mxu0 %v221
    %547 = vmatpush.msra.mxu0 %v220
    %548 = vmatpush.msra.mxu0 %v219
    %549 = vmatpush.msra.mxu0 %v218
    %550 = vmatpush.msra.mxu0 %v217
    %551 = vmatpush.msra.mxu0 %v216
    %552 = vmatpush.msra.mxu0 %v215
    %553 = vmatpush.msra.mxu0 %v214
    %554 = vmatpush.msra.mxu0 %v213
    %555 = vmatmul.f32.gmra.mxu0 %v31
    %v556 = vpop.f32.mrf.mxu0
    %v557 = vadd.f32 %v534, %v556
    %558 = vmatmul.f32.gmra.mxu0 %v47
    %v559 = vpop.f32.mrf.mxu0
    %v560 = vadd.f32 %v537, %v559
    %561 = vdwg.mxu0
    %562 = vmatpush.msra.mxu0 %v244
    %563 = vmatpush.msra.mxu0 %v243
    %564 = vmatpush.msra.mxu0 %v242
    %565 = vmatpush.msra.mxu0 %v241
    %566 = vmatpush.msra.mxu0 %v240
    %567 = vmatpush.msra.mxu0 %v239
    %568 = vmatpush.msra.mxu0 %v238
    %569 = vmatpush.msra.mxu0 %v237
    %570 = vmatpush.msra.mxu0 %v236
    %571 = vmatpush.msra.mxu0 %v235
    %572 = vmatpush.msra.mxu0 %v234
    %573 = vmatpush.msra.mxu0 %v233
    %574 = vmatpush.msra.mxu0 %v232
    %575 = vmatpush.msra.mxu0 %v231
    %576 = vmatpush.msra.mxu0 %v230
    %577 = vmatpush.msra.mxu0 %v229
    %578 = vmatmul.f32.gmra.mxu0 %v32
    %v579 = vpop.f32.mrf.mxu0
    %v580 = vadd.f32 %v557, %v579
    %581 = vmatmul.f32.gmra.mxu0 %v48
    %v582 = vpop.f32.mrf.mxu0
    %v583 = vadd.f32 %v560, %v582
    %584 = vdwg.mxu0
    %585 = vmatpush.msra.mxu0 %v260
    %586 = vmatpush.msra.mxu0 %v259
    %587 = vmatpush.msra.mxu0 %v258
    %588 = vmatpush.msra.mxu0 %v257
    %589 = vmatpush.msra.mxu0 %v256
    %590 = vmatpush.msra.mxu0 %v255
    %591 = vmatpush.msra.mxu0 %v254
    %592 = vmatpush.msra.mxu0 %v253
    %593 = vmatpush.msra.mxu0 %v252
    %594 = vmatpush.msra.mxu0 %v251
    %595 = vmatpush.msra.mxu0 %v250
    %596 = vmatpush.msra.mxu0 %v249
    %597 = vmatpush.msra.mxu0 %v248
    %598 = vmatpush.msra.mxu0 %v247
    %599 = vmatpush.msra.mxu0 %v246
    %600 = vmatpush.msra.mxu0 %v245
    %601 = vmatmul.f32.gmra.mxu0 %v33
    %v602 = vpop.f32.mrf.mxu0
    %v603 = vadd.f32 %v580, %v602
    %604 = vmatmul.f32.gmra.mxu0 %v49
    %v605 = vpop.f32.mrf.mxu0
    %v606 = vadd.f32 %v583, %v605
    %607 = vdwg.mxu0
    %608 = vmatpush.msra.mxu0 %v276
    %609 = vmatpush.msra.mxu0 %v275
    %610 = vmatpush.msra.mxu0 %v274
    %611 = vmatpush.msra.mxu0 %v273
    %612 = vmatpush.msra.mxu0 %v272
    %613 = vmatpush.msra.mxu0 %v271
    %614 = vmatpush.msra.mxu0 %v270
    %615 = vmatpush.msra.mxu0 %v269
    %616 = vmatpush.msra.mxu0 %v268
    %617 = vmatpush.msra.mxu0 %v267
    %618 = vmatpush.msra.mxu0 %v266
    %619 = vmatpush.msra.mxu0 %v265
    %620 = vmatpush.msra.mxu0 %v264
    %621 = vmatpush.msra.mxu0 %v263
    %622 = vmatpush.msra.mxu0 %v262
    %623 = vmatpush.msra.mxu0 %v261
    %624 = vmatmul.f32.gmra.mxu0 %v34
    %v625 = vpop.f32.mrf.mxu0
    %v626 = vadd.f32 %v603, %v625
    %627 = vmatmul.f32.gmra.mxu0 %v50
    %v628 = vpop.f32.mrf.mxu0
    %v629 = vadd.f32 %v606, %v628
    %630 = vdwg.mxu0
    %631 = vmatpush.msra.mxu0 %v292
    %632 = vmatpush.msra.mxu0 %v291
    %633 = vmatpush.msra.mxu0 %v290
    %634 = vmatpush.msra.mxu0 %v289
    %635 = vmatpush.msra.mxu0 %v288
    %636 = vmatpush.msra.mxu0 %v287
    %637 = vmatpush.msra.mxu0 %v286
    %638 = vmatpush.msra.mxu0 %v285
    %639 = vmatpush.msra.mxu0 %v284
    %640 = vmatpush.msra.mxu0 %v283
    %641 = vmatpush.msra.mxu0 %v282
    %642 = vmatpush.msra.mxu0 %v281
    %643 = vmatpush.msra.mxu0 %v280
    %644 = vmatpush.msra.mxu0 %v279
    %645 = vmatpush.msra.mxu0 %v278
    %646 = vmatpush.msra.mxu0 %v277
    %647 = vmatmul.f32.gmra.mxu0 %v35
    %v648 = vpop.f32.mrf.mxu0
    %v649 = vadd.f32 %v626, %v648
    %650 = vmatmul.f32.gmra.mxu0 %v51
    %v651 = vpop.f32.mrf.mxu0
    %v652 = vadd.f32 %v629, %v651
    %653 = vdwg.mxu0
    %654 = vmatpush.msra.mxu0 %v308
    %655 = vmatpush.msra.mxu0 %v307
    %656 = vmatpush.msra.mxu0 %v306
    %657 = vmatpush.msra.mxu0 %v305
    %658 = vmatpush.msra.mxu0 %v304
    %659 = vmatpush.msra.mxu0 %v303
    %660 = vmatpush.msra.mxu0 %v302
    %661 = vmatpush.msra.mxu0 %v301
    %662 = vmatpush.msra.mxu0 %v300
    %663 = vmatpush.msra.mxu0 %v299
    %664 = vmatpush.msra.mxu0 %v298
    %665 = vmatpush.msra.mxu0 %v297
    %666 = vmatpush.msra.mxu0 %v296
    %667 = vmatpush.msra.mxu0 %v295
    %668 = vmatpush.msra.mxu0 %v294
    %669 = vmatpush.msra.mxu0 %v293
    %670 = vmatmul.f32.gmra.mxu0 %v36
    %v671 = vpop.f32.mrf.mxu0
    %v672 = vadd.f32 %v649, %v671
    %673 = vmatmul.f32.gmra.mxu0 %v52
    %v674 = vpop.f32.mrf.mxu0
    %v675 = vadd.f32 %v652, %v674
    %676 = vdwg.mxu0
    %v677 = vmul.f32 %v672, 0.00390625
    %v678 = vmul.f32 %v675, 0.00390625
    %v679 = vld [vmem:[%s3] sm:$0xff]
    %vm680 = vcmask 64512
    %v682 = vsel %vm680, %v677, 0
    %v685 = vsel %vm680, %v678, 0
    %687 = vmatpush.msra.mxu0 0.0
    %688 = vmatpush.msra.mxu0 0.0
    %689 = vmatpush.msra.mxu0 0.0
    %690 = vmatpush.msra.mxu0 0.0
    %691 = vmatpush.msra.mxu0 0.0
    %692 = vmatpush.msra.mxu0 0.0
    %693 = vmatpush.msra.mxu0 0.0
    %694 = vmatpush.msra.mxu0 0.0
    %695 = vmatpush.msra.mxu0 0.0
    %696 = vmatpush.msra.mxu0 0.0
    %697 = vmatpush.msra.mxu0 0.0
    %698 = vmatpush.msra.mxu0 0.0
    %699 = vmatpush.msra.mxu0 0.0
    %700 = vmatpush.msra.mxu0 0.0
    %701 = vmatpush.msra.mxu0 0.0
    %702 = vmatpush.msra.mxu0 %v679
    %703 = vmatmul.f32.gmra.mxu0 %v682
    %v704 = vpop.f32.mrf.mxu0
    %v705 = vadd.f32 0.0, %v704
    %706 = vmatmul.f32.gmra.mxu0 %v685
    %v707 = vpop.f32.mrf.mxu0
    %v708 = vadd.f32 0.0, %v707
    %709 = vdwg.mxu0
    %v710 = vmax.f32 %v705, 0.0
    %v711 = vmax.f32 %v708, 0.0
    %v712 = vld [vmem:[%s4] sm:$0x3]
    %vm713 = vcmask 15360
    %v715 = vsel %vm713, %v710, 0
    %v718 = vsel %vm713, %v711, 0
    %vm720 = vcmask 1041408
    %v722 = vsel %vm720, %v712, 0
    %724 = vmatpush.msra.mxu0 0.0
    %725 = vmatpush.msra.mxu0 0.0
    %726 = vmatpush.msra.mxu0 0.0
    %727 = vmatpush.msra.mxu0 0.0
    %728 = vmatpush.msra.mxu0 0.0
    %729 = vmatpush.msra.mxu0 0.0
    %730 = vmatpush.msra.mxu0 0.0
    %731 = vmatpush.msra.mxu0 0.0
    %732 = vmatpush.msra.mxu0 0.0
    %733 = vmatpush.msra.mxu0 0.0
    %734 = vmatpush.msra.mxu0 0.0
    %735 = vmatpush.msra.mxu0 0.0
    %736 = vmatpush.msra.mxu0 0.0
    %737 = vmatpush.msra.mxu0 0.0
    %738 = vmatpush.msra.mxu0 0.0
    %739 = vmatpush.msra.mxu0 %v722
    %740 = vmatmul.f32.gmra.mxu0 %v715
    %v741 = vpop.f32.mrf.mxu0
    %v742 = vadd.f32 0.0, %v741
    %743 = vmatmul.f32.gmra.mxu0 %v718
    %v744 = vpop.f32.mrf.mxu0
    %v745 = vadd.f32 0.0, %v744
    %746 = vdwg.mxu0
    %v747 = vxor.u32 %v742, 2147483648
    %v748 = vxor.u32 %v745, 2147483648
    %v749 = vmul.f32 %v747, 1.442695
    %v750 = vpow.pop %v749
    %v751 = vmul.f32 %v748, 1.442695
    %v752 = vpow.pop %v751
    %v753 = vadd.f32 %v750, 1.0
    %v754 = vadd.f32 %v752, 1.0
    %v755 = vrcp.pop %v753
    %v756 = vmul.f32 %v753, %v755
    %v757 = vsub.f32 1.0, %v756
    %v758 = vmul.f32 %v755, %v757
    %v759 = vadd.f32 %v755, %v758
    %vm760 = vweird.f32 %v753
    %vm761 = vweird.f32 %v755
    %vm762 = vmor %vm760, %vm761
    %v763 = vsel %vm762, %v755, %v759
    %v764 = vand.u32 2147483647, %v753
    %vm765 = vcmp.eq.f32.partialorder %v764, 8.507059e+37
    %v766 = vand.u32 %v753, 2147483648
    %v767 = vor.u32 1.1754944e-38, %v766
    %v768 = vsel %vm765, %v767, %v763
    %v769 = vmul.f32 1.0, %v768
    %v770 = vrcp.pop %v754
    %v771 = vmul.f32 %v754, %v770
    %v772 = vsub.f32 1.0, %v771
    %v773 = vmul.f32 %v770, %v772
    %v774 = vadd.f32 %v770, %v773
    %vm775 = vweird.f32 %v754
    %vm776 = vweird.f32 %v770
    %vm777 = vmor %vm775, %vm776
    %v778 = vsel %vm777, %v770, %v774
    %v779 = vand.u32 2147483647, %v754
    %vm780 = vcmp.eq.f32.partialorder %v779, 8.507059e+37
    %v781 = vand.u32 %v754, 2147483648
    %v782 = vor.u32 1.1754944e-38, %v781
    %v783 = vsel %vm780, %v782, %v778
    %v784 = vmul.f32 1.0, %v783
    %v785 = vld [vmem:[%s2] sm:$0xff]
    %v786 = vld [vmem:[%s2 + $0x8] sm:$0xff]
    %v787 = vld [vmem:[%s2 + $0x10] sm:$0xff]
    %v788 = vld [vmem:[%s2 + $0x18] sm:$0xff]
    %v789 = vld [vmem:[%s2 + $0x20] sm:$0xff]
    %v790 = vld [vmem:[%s2 + $0x28] sm:$0xff]
    %v791 = vld [vmem:[%s2 + $0x30] sm:$0xff]
    %v792 = vld [vmem:[%s2 + $0x38] sm:$0xff]
    %v793 = vld [vmem:[%s2 + $0x40] sm:$0xff]
    %v794 = vld [vmem:[%s2 + $0x48] sm:$0xff]
    %v795 = vld [vmem:[%s2 + $0x50] sm:$0xff]
    %v796 = vld [vmem:[%s2 + $0x58] sm:$0xff]
    %v797 = vld [vmem:[%s2 + $0x60] sm:$0xff]
    %v798 = vld [vmem:[%s2 + $0x68] sm:$0xff]
    %v799 = vld [vmem:[%s2 + $0x70] sm:$0xff]
    %v800 = vld [vmem:[%s2 + $0x78] sm:$0xff]
    %v802 = vsel %vm680, %v769, 0
    %v805 = vsel %vm680, %v784, 0
    %807 = vmatpush.msra.mxu0 0.0
    %808 = vmatpush.msra.mxu0 0.0
    %809 = vmatpush.msra.mxu0 0.0
    %810 = vmatpush.msra.mxu0 0.0
    %811 = vmatpush.msra.mxu0 0.0
    %812 = vmatpush.msra.mxu0 0.0
    %813 = vmatpush.msra.mxu0 0.0
    %814 = vmatpush.msra.mxu0 0.0
    %815 = vmatpush.msra.mxu0 0.0
    %816 = vmatpush.msra.mxu0 0.0
    %817 = vmatpush.msra.mxu0 0.0
    %818 = vmatpush.msra.mxu0 0.0
    %819 = vmatpush.msra.mxu0 0.0
    %820 = vmatpush.msra.mxu0 0.0
    %821 = vmatpush.msra.mxu0 0.0
    %822 = vmatpush.msra.mxu0 %v785
    %823 = vmatmul.f32.gmra.mxu0 %v802
    %v824 = vpop.f32.mrf.mxu0
    %v825 = vadd.f32 0.0, %v824
    %826 = vmatmul.f32.gmra.mxu0 %v805
    %v827 = vpop.f32.mrf.mxu0
    %v828 = vadd.f32 0.0, %v827
    %829 = vdwg.mxu0
    %830 = vmatpush.msra.mxu0 0.0
    %831 = vmatpush.msra.mxu0 0.0
    %832 = vmatpush.msra.mxu0 0.0
    %833 = vmatpush.msra.mxu0 0.0
    %834 = vmatpush.msra.mxu0 0.0
    %835 = vmatpush.msra.mxu0 0.0
    %836 = vmatpush.msra.mxu0 0.0
    %837 = vmatpush.msra.mxu0 0.0
    %838 = vmatpush.msra.mxu0 0.0
    %839 = vmatpush.msra.mxu0 0.0
    %840 = vmatpush.msra.mxu0 0.0
    %841 = vmatpush.msra.mxu0 0.0
    %842 = vmatpush.msra.mxu0 0.0
    %843 = vmatpush.msra.mxu0 0.0
    %844 = vmatpush.msra.mxu0 0.0
    %845 = vmatpush.msra.mxu0 %v786
    %846 = vmatmul.f32.gmra.mxu0 %v802
    %v847 = vpop.f32.mrf.mxu0
    %v848 = vadd.f32 0.0, %v847
    %849 = vmatmul.f32.gmra.mxu0 %v805
    %v850 = vpop.f32.mrf.mxu0
    %v851 = vadd.f32 0.0, %v850
    %852 = vdwg.mxu0
    %853 = vmatpush.msra.mxu0 0.0
    %854 = vmatpush.msra.mxu0 0.0
    %855 = vmatpush.msra.mxu0 0.0
    %856 = vmatpush.msra.mxu0 0.0
    %857 = vmatpush.msra.mxu0 0.0
    %858 = vmatpush.msra.mxu0 0.0
    %859 = vmatpush.msra.mxu0 0.0
    %860 = vmatpush.msra.mxu0 0.0
    %861 = vmatpush.msra.mxu0 0.0
    %862 = vmatpush.msra.mxu0 0.0
    %863 = vmatpush.msra.mxu0 0.0
    %864 = vmatpush.msra.mxu0 0.0
    %865 = vmatpush.msra.mxu0 0.0
    %866 = vmatpush.msra.mxu0 0.0
    %867 = vmatpush.msra.mxu0 0.0
    %868 = vmatpush.msra.mxu0 %v787
    %869 = vmatmul.f32.gmra.mxu0 %v802
    %v870 = vpop.f32.mrf.mxu0
    %v871 = vadd.f32 0.0, %v870
    %872 = vmatmul.f32.gmra.mxu0 %v805
    %v873 = vpop.f32.mrf.mxu0
    %v874 = vadd.f32 0.0, %v873
    %875 = vdwg.mxu0
    %876 = vmatpush.msra.mxu0 0.0
    %877 = vmatpush.msra.mxu0 0.0
    %878 = vmatpush.msra.mxu0 0.0
    %879 = vmatpush.msra.mxu0 0.0
    %880 = vmatpush.msra.mxu0 0.0
    %881 = vmatpush.msra.mxu0 0.0
    %882 = vmatpush.msra.mxu0 0.0
    %883 = vmatpush.msra.mxu0 0.0
    %884 = vmatpush.msra.mxu0 0.0
    %885 = vmatpush.msra.mxu0 0.0
    %886 = vmatpush.msra.mxu0 0.0
    %887 = vmatpush.msra.mxu0 0.0
    %888 = vmatpush.msra.mxu0 0.0
    %889 = vmatpush.msra.mxu0 0.0
    %890 = vmatpush.msra.mxu0 0.0
    %891 = vmatpush.msra.mxu0 %v788
    %892 = vmatmul.f32.gmra.mxu0 %v802
    %v893 = vpop.f32.mrf.mxu0
    %v894 = vadd.f32 0.0, %v893
    %895 = vmatmul.f32.gmra.mxu0 %v805
    %v896 = vpop.f32.mrf.mxu0
    %v897 = vadd.f32 0.0, %v896
    %898 = vdwg.mxu0
    %899 = vmatpush.msra.mxu0 0.0
    %900 = vmatpush.msra.mxu0 0.0
    %901 = vmatpush.msra.mxu0 0.0
    %902 = vmatpush.msra.mxu0 0.0
    %903 = vmatpush.msra.mxu0 0.0
    %904 = vmatpush.msra.mxu0 0.0
    %905 = vmatpush.msra.mxu0 0.0
    %906 = vmatpush.msra.mxu0 0.0
    %907 = vmatpush.msra.mxu0 0.0
    %908 = vmatpush.msra.mxu0 0.0
    %909 = vmatpush.msra.mxu0 0.0
    %910 = vmatpush.msra.mxu0 0.0
    %911 = vmatpush.msra.mxu0 0.0
    %912 = vmatpush.msra.mxu0 0.0
    %913 = vmatpush.msra.mxu0 0.0
    %914 = vmatpush.msra.mxu0 %v789
    %915 = vmatmul.f32.gmra.mxu0 %v802
    %v916 = vpop.f32.mrf.mxu0
    %v917 = vadd.f32 0.0, %v916
    %918 = vmatmul.f32.gmra.mxu0 %v805
    %v919 = vpop.f32.mrf.mxu0
    %v920 = vadd.f32 0.0, %v919
    %921 = vdwg.mxu0
    %922 = vmatpush.msra.mxu0 0.0
    %923 = vmatpush.msra.mxu0 0.0
    %924 = vmatpush.msra.mxu0 0.0
    %925 = vmatpush.msra.mxu0 0.0
    %926 = vmatpush.msra.mxu0 0.0
    %927 = vmatpush.msra.mxu0 0.0
    %928 = vmatpush.msra.mxu0 0.0
    %929 = vmatpush.msra.mxu0 0.0
    %930 = vmatpush.msra.mxu0 0.0
    %931 = vmatpush.msra.mxu0 0.0
    %932 = vmatpush.msra.mxu0 0.0
    %933 = vmatpush.msra.mxu0 0.0
    %934 = vmatpush.msra.mxu0 0.0
    %935 = vmatpush.msra.mxu0 0.0
    %936 = vmatpush.msra.mxu0 0.0
    %937 = vmatpush.msra.mxu0 %v790
    %938 = vmatmul.f32.gmra.mxu0 %v802
    %v939 = vpop.f32.mrf.mxu0
    %v940 = vadd.f32 0.0, %v939
    %941 = vmatmul.f32.gmra.mxu0 %v805
    %v942 = vpop.f32.mrf.mxu0
    %v943 = vadd.f32 0.0, %v942
    %944 = vdwg.mxu0
    %945 = vmatpush.msra.mxu0 0.0
    %946 = vmatpush.msra.mxu0 0.0
    %947 = vmatpush.msra.mxu0 0.0
    %948 = vmatpush.msra.mxu0 0.0
    %949 = vmatpush.msra.mxu0 0.0
    %950 = vmatpush.msra.mxu0 0.0
    %951 = vmatpush.msra.mxu0 0.0
    %952 = vmatpush.msra.mxu0 0.0
    %953 = vmatpush.msra.mxu0 0.0
    %954 = vmatpush.msra.mxu0 0.0
    %955 = vmatpush.msra.mxu0 0.0
    %956 = vmatpush.msra.mxu0 0.0
    %957 = vmatpush.msra.mxu0 0.0
    %958 = vmatpush.msra.mxu0 0.0
    %959 = vmatpush.msra.mxu0 0.0
    %960 = vmatpush.msra.mxu0 %v791
    %961 = vmatmul.f32.gmra.mxu0 %v802
    %v962 = vpop.f32.mrf.mxu0
    %v963 = vadd.f32 0.0, %v962
    %964 = vmatmul.f32.gmra.mxu0 %v805
    %v965 = vpop.f32.mrf.mxu0
    %v966 = vadd.f32 0.0, %v965
    %967 = vdwg.mxu0
    %968 = vmatpush.msra.mxu0 0.0
    %969 = vmatpush.msra.mxu0 0.0
    %970 = vmatpush.msra.mxu0 0.0
    %971 = vmatpush.msra.mxu0 0.0
    %972 = vmatpush.msra.mxu0 0.0
    %973 = vmatpush.msra.mxu0 0.0
    %974 = vmatpush.msra.mxu0 0.0
    %975 = vmatpush.msra.mxu0 0.0
    %976 = vmatpush.msra.mxu0 0.0
    %977 = vmatpush.msra.mxu0 0.0
    %978 = vmatpush.msra.mxu0 0.0
    %979 = vmatpush.msra.mxu0 0.0
    %980 = vmatpush.msra.mxu0 0.0
    %981 = vmatpush.msra.mxu0 0.0
    %982 = vmatpush.msra.mxu0 0.0
    %983 = vmatpush.msra.mxu0 %v792
    %984 = vmatmul.f32.gmra.mxu0 %v802
    %v985 = vpop.f32.mrf.mxu0
    %v986 = vadd.f32 0.0, %v985
    %987 = vmatmul.f32.gmra.mxu0 %v805
    %v988 = vpop.f32.mrf.mxu0
    %v989 = vadd.f32 0.0, %v988
    %990 = vdwg.mxu0
    %991 = vmatpush.msra.mxu0 0.0
    %992 = vmatpush.msra.mxu0 0.0
    %993 = vmatpush.msra.mxu0 0.0
    %994 = vmatpush.msra.mxu0 0.0
    %995 = vmatpush.msra.mxu0 0.0
    %996 = vmatpush.msra.mxu0 0.0
    %997 = vmatpush.msra.mxu0 0.0
    %998 = vmatpush.msra.mxu0 0.0
    %999 = vmatpush.msra.mxu0 0.0
    %1000 = vmatpush.msra.mxu0 0.0
    %1001 = vmatpush.msra.mxu0 0.0
    %1002 = vmatpush.msra.mxu0 0.0
    %1003 = vmatpush.msra.mxu0 0.0
    %1004 = vmatpush.msra.mxu0 0.0
    %1005 = vmatpush.msra.mxu0 0.0
    %1006 = vmatpush.msra.mxu0 %v793
    %1007 = vmatmul.f32.gmra.mxu0 %v802
    %v1008 = vpop.f32.mrf.mxu0
    %v1009 = vadd.f32 0.0, %v1008
    %1010 = vmatmul.f32.gmra.mxu0 %v805
    %v1011 = vpop.f32.mrf.mxu0
    %v1012 = vadd.f32 0.0, %v1011
    %1013 = vdwg.mxu0
    %1014 = vmatpush.msra.mxu0 0.0
    %1015 = vmatpush.msra.mxu0 0.0
    %1016 = vmatpush.msra.mxu0 0.0
    %1017 = vmatpush.msra.mxu0 0.0
    %1018 = vmatpush.msra.mxu0 0.0
    %1019 = vmatpush.msra.mxu0 0.0
    %1020 = vmatpush.msra.mxu0 0.0
    %1021 = vmatpush.msra.mxu0 0.0
    %1022 = vmatpush.msra.mxu0 0.0
    %1023 = vmatpush.msra.mxu0 0.0
    %1024 = vmatpush.msra.mxu0 0.0
    %1025 = vmatpush.msra.mxu0 0.0
    %1026 = vmatpush.msra.mxu0 0.0
    %1027 = vmatpush.msra.mxu0 0.0
    %1028 = vmatpush.msra.mxu0 0.0
    %1029 = vmatpush.msra.mxu0 %v794
    %1030 = vmatmul.f32.gmra.mxu0 %v802
    %v1031 = vpop.f32.mrf.mxu0
    %v1032 = vadd.f32 0.0, %v1031
    %1033 = vmatmul.f32.gmra.mxu0 %v805
    %v1034 = vpop.f32.mrf.mxu0
    %v1035 = vadd.f32 0.0, %v1034
    %1036 = vdwg.mxu0
    %1037 = vmatpush.msra.mxu0 0.0
    %1038 = vmatpush.msra.mxu0 0.0
    %1039 = vmatpush.msra.mxu0 0.0
    %1040 = vmatpush.msra.mxu0 0.0
    %1041 = vmatpush.msra.mxu0 0.0
    %1042 = vmatpush.msra.mxu0 0.0
    %1043 = vmatpush.msra.mxu0 0.0
    %1044 = vmatpush.msra.mxu0 0.0
    %1045 = vmatpush.msra.mxu0 0.0
    %1046 = vmatpush.msra.mxu0 0.0
    %1047 = vmatpush.msra.mxu0 0.0
    %1048 = vmatpush.msra.mxu0 0.0
    %1049 = vmatpush.msra.mxu0 0.0
    %1050 = vmatpush.msra.mxu0 0.0
    %1051 = vmatpush.msra.mxu0 0.0
    %1052 = vmatpush.msra.mxu0 %v795
    %1053 = vmatmul.f32.gmra.mxu0 %v802
    %v1054 = vpop.f32.mrf.mxu0
    %v1055 = vadd.f32 0.0, %v1054
    %1056 = vmatmul.f32.gmra.mxu0 %v805
    %v1057 = vpop.f32.mrf.mxu0
    %v1058 = vadd.f32 0.0, %v1057
    %1059 = vdwg.mxu0
    %1060 = vmatpush.msra.mxu0 0.0
    %1061 = vmatpush.msra.mxu0 0.0
    %1062 = vmatpush.msra.mxu0 0.0
    %1063 = vmatpush.msra.mxu0 0.0
    %1064 = vmatpush.msra.mxu0 0.0
    %1065 = vmatpush.msra.mxu0 0.0
    %1066 = vmatpush.msra.mxu0 0.0
    %1067 = vmatpush.msra.mxu0 0.0
    %1068 = vmatpush.msra.mxu0 0.0
    %1069 = vmatpush.msra.mxu0 0.0
    %1070 = vmatpush.msra.mxu0 0.0
    %1071 = vmatpush.msra.mxu0 0.0
    %1072 = vmatpush.msra.mxu0 0.0
    %1073 = vmatpush.msra.mxu0 0.0
    %1074 = vmatpush.msra.mxu0 0.0
    %1075 = vmatpush.msra.mxu0 %v796
    %1076 = vmatmul.f32.gmra.mxu0 %v802
    %v1077 = vpop.f32.mrf.mxu0
    %v1078 = vadd.f32 0.0, %v1077
    %1079 = vmatmul.f32.gmra.mxu0 %v805
    %v1080 = vpop.f32.mrf.mxu0
    %v1081 = vadd.f32 0.0, %v1080
    %1082 = vdwg.mxu0
    %1083 = vmatpush.msra.mxu0 0.0
    %1084 = vmatpush.msra.mxu0 0.0
    %1085 = vmatpush.msra.mxu0 0.0
    %1086 = vmatpush.msra.mxu0 0.0
    %1087 = vmatpush.msra.mxu0 0.0
    %1088 = vmatpush.msra.mxu0 0.0
    %1089 = vmatpush.msra.mxu0 0.0
    %1090 = vmatpush.msra.mxu0 0.0
    %1091 = vmatpush.msra.mxu0 0.0
    %1092 = vmatpush.msra.mxu0 0.0
    %1093 = vmatpush.msra.mxu0 0.0
    %1094 = vmatpush.msra.mxu0 0.0
    %1095 = vmatpush.msra.mxu0 0.0
    %1096 = vmatpush.msra.mxu0 0.0
    %1097 = vmatpush.msra.mxu0 0.0
    %1098 = vmatpush.msra.mxu0 %v797
    %1099 = vmatmul.f32.gmra.mxu0 %v802
    %v1100 = vpop.f32.mrf.mxu0
    %v1101 = vadd.f32 0.0, %v1100
    %1102 = vmatmul.f32.gmra.mxu0 %v805
    %v1103 = vpop.f32.mrf.mxu0
    %v1104 = vadd.f32 0.0, %v1103
    %1105 = vdwg.mxu0
    %1106 = vmatpush.msra.mxu0 0.0
    %1107 = vmatpush.msra.mxu0 0.0
    %1108 = vmatpush.msra.mxu0 0.0
    %1109 = vmatpush.msra.mxu0 0.0
    %1110 = vmatpush.msra.mxu0 0.0
    %1111 = vmatpush.msra.mxu0 0.0
    %1112 = vmatpush.msra.mxu0 0.0
    %1113 = vmatpush.msra.mxu0 0.0
    %1114 = vmatpush.msra.mxu0 0.0
    %1115 = vmatpush.msra.mxu0 0.0
    %1116 = vmatpush.msra.mxu0 0.0
    %1117 = vmatpush.msra.mxu0 0.0
    %1118 = vmatpush.msra.mxu0 0.0
    %1119 = vmatpush.msra.mxu0 0.0
    %1120 = vmatpush.msra.mxu0 0.0
    %1121 = vmatpush.msra.mxu0 %v798
    %1122 = vmatmul.f32.gmra.mxu0 %v802
    %v1123 = vpop.f32.mrf.mxu0
    %v1124 = vadd.f32 0.0, %v1123
    %1125 = vmatmul.f32.gmra.mxu0 %v805
    %v1126 = vpop.f32.mrf.mxu0
    %v1127 = vadd.f32 0.0, %v1126
    %1128 = vdwg.mxu0
    %1129 = vmatpush.msra.mxu0 0.0
    %1130 = vmatpush.msra.mxu0 0.0
    %1131 = vmatpush.msra.mxu0 0.0
    %1132 = vmatpush.msra.mxu0 0.0
    %1133 = vmatpush.msra.mxu0 0.0
    %1134 = vmatpush.msra.mxu0 0.0
    %1135 = vmatpush.msra.mxu0 0.0
    %1136 = vmatpush.msra.mxu0 0.0
    %1137 = vmatpush.msra.mxu0 0.0
    %1138 = vmatpush.msra.mxu0 0.0
    %1139 = vmatpush.msra.mxu0 0.0
    %1140 = vmatpush.msra.mxu0 0.0
    %1141 = vmatpush.msra.mxu0 0.0
    %1142 = vmatpush.msra.mxu0 0.0
    %1143 = vmatpush.msra.mxu0 0.0
    %1144 = vmatpush.msra.mxu0 %v799
    %1145 = vmatmul.f32.gmra.mxu0 %v802
    %v1146 = vpop.f32.mrf.mxu0
    %v1147 = vadd.f32 0.0, %v1146
    %1148 = vmatmul.f32.gmra.mxu0 %v805
    %v1149 = vpop.f32.mrf.mxu0
    %v1150 = vadd.f32 0.0, %v1149
    %1151 = vdwg.mxu0
    %1152 = vmatpush.msra.mxu0 0.0
    %1153 = vmatpush.msra.mxu0 0.0
    %1154 = vmatpush.msra.mxu0 0.0
    %1155 = vmatpush.msra.mxu0 0.0
    %1156 = vmatpush.msra.mxu0 0.0
    %1157 = vmatpush.msra.mxu0 0.0
    %1158 = vmatpush.msra.mxu0 0.0
    %1159 = vmatpush.msra.mxu0 0.0
    %1160 = vmatpush.msra.mxu0 0.0
    %1161 = vmatpush.msra.mxu0 0.0
    %1162 = vmatpush.msra.mxu0 0.0
    %1163 = vmatpush.msra.mxu0 0.0
    %1164 = vmatpush.msra.mxu0 0.0
    %1165 = vmatpush.msra.mxu0 0.0
    %1166 = vmatpush.msra.mxu0 0.0
    %1167 = vmatpush.msra.mxu0 %v800
    %1168 = vmatmul.f32.gmra.mxu0 %v802
    %v1169 = vpop.f32.mrf.mxu0
    %v1170 = vadd.f32 0.0, %v1169
    %1171 = vmatmul.f32.gmra.mxu0 %v805
    %v1172 = vpop.f32.mrf.mxu0
    %v1173 = vadd.f32 0.0, %v1172
    %1174 = vdwg.mxu0
    %v1175 = vmul.f32 %v21, %v825
    %v1176 = vmul.f32 %v22, %v848
    %v1177 = vmul.f32 %v23, %v871
    %v1178 = vmul.f32 %v24, %v894
    %v1179 = vmul.f32 %v25, %v917
    %v1180 = vmul.f32 %v26, %v940
    %v1181 = vmul.f32 %v27, %v963
    %v1182 = vmul.f32 %v28, %v986
    %v1183 = vmul.f32 %v29, %v1009
    %v1184 = vmul.f32 %v30, %v1032
    %v1185 = vmul.f32 %v31, %v1055
    %v1186 = vmul.f32 %v32, %v1078
    %v1187 = vmul.f32 %v33, %v1101
    %v1188 = vmul.f32 %v34, %v1124
    %v1189 = vmul.f32 %v35, %v1147
    %v1190 = vmul.f32 %v36, %v1170
    %v1191 = vmul.f32 %v37, %v828
    %v1192 = vmul.f32 %v38, %v851
    %v1193 = vmul.f32 %v39, %v874
    %v1194 = vmul.f32 %v40, %v897
    %v1195 = vmul.f32 %v41, %v920
    %v1196 = vmul.f32 %v42, %v943
    %v1197 = vmul.f32 %v43, %v966
    %v1198 = vmul.f32 %v44, %v989
    %v1199 = vmul.f32 %v45, %v1012
    %v1200 = vmul.f32 %v46, %v1035
    %v1201 = vmul.f32 %v47, %v1058
    %v1202 = vmul.f32 %v48, %v1081
    %v1203 = vmul.f32 %v49, %v1104
    %v1204 = vmul.f32 %v50, %v1127
    %v1205 = vmul.f32 %v51, %v1150
    %v1206 = vmul.f32 %v52, %v1173
    %1207 = vst [vmem:[#allocation2] sm:$0xff] %v1175
    %1208 = vst [vmem:[#allocation2 + $0x8] sm:$0xff] %v1176
    %1209 = vst [vmem:[#allocation2 + $0x10] sm:$0xff] %v1177
    %1210 = vst [vmem:[#allocation2 + $0x18] sm:$0xff] %v1178
    %1211 = vst [vmem:[#allocation2 + $0x20] sm:$0xff] %v1179
    %1212 = vst [vmem:[#allocation2 + $0x28] sm:$0xff] %v1180
    %1213 = vst [vmem:[#allocation2 + $0x30] sm:$0xff] %v1181
    %1214 = vst [vmem:[#allocation2 + $0x38] sm:$0xff] %v1182
    %1215 = vst [vmem:[#allocation2 + $0x40] sm:$0xff] %v1183
    %1216 = vst [vmem:[#allocation2 + $0x48] sm:$0xff] %v1184
    %1217 = vst [vmem:[#allocation2 + $0x50] sm:$0xff] %v1185
    %1218 = vst [vmem:[#allocation2 + $0x58] sm:$0xff] %v1186
    %1219 = vst [vmem:[#allocation2 + $0x60] sm:$0xff] %v1187
    %1220 = vst [vmem:[#allocation2 + $0x68] sm:$0xff] %v1188
    %1221 = vst [vmem:[#allocation2 + $0x70] sm:$0xff] %v1189
    %1222 = vst [vmem:[#allocation2 + $0x78] sm:$0xff] %v1190
    %1223 = vst [vmem:[#allocation2 + $0x80] sm:$0xff] %v1191
    %1224 = vst [vmem:[#allocation2 + $0x88] sm:$0xff] %v1192
    %1225 = vst [vmem:[#allocation2 + $0x90] sm:$0xff] %v1193
    %1226 = vst [vmem:[#allocation2 + $0x98] sm:$0xff] %v1194
    %1227 = vst [vmem:[#allocation2 + $0xa0] sm:$0xff] %v1195
    %1228 = vst [vmem:[#allocation2 + $0xa8] sm:$0xff] %v1196
    %1229 = vst [vmem:[#allocation2 + $0xb0] sm:$0xff] %v1197
    %1230 = vst [vmem:[#allocation2 + $0xb8] sm:$0xff] %v1198
    %1231 = vst [vmem:[#allocation2 + $0xc0] sm:$0xff] %v1199
    %1232 = vst [vmem:[#allocation2 + $0xc8] sm:$0xff] %v1200
    %1233 = vst [vmem:[#allocation2 + $0xd0] sm:$0xff] %v1201
    %1234 = vst [vmem:[#allocation2 + $0xd8] sm:$0xff] %v1202
    %1235 = vst [vmem:[#allocation2 + $0xe0] sm:$0xff] %v1203
    %1236 = vst [vmem:[#allocation2 + $0xe8] sm:$0xff] %v1204
    %1237 = vst [vmem:[#allocation2 + $0xf0] sm:$0xff] %v1205
    %1238 = vst [vmem:[#allocation2 + $0xf8] sm:$0xff] %v1206
    // Predicated region
    $region22: #{tpu_custom_call.1} parent=1 // pred_check
      _
    $region23: #{tpu_custom_call.1} parent=1 // pred_check_branch
      %1240 = sbr.rel (0) target = $region25
    $region24: #{tpu_custom_call.1} parent=1 // pred_region
      %1242 = vsyncadd [#allocation3], 0
      %s1243 = sshll.u32 [#allocation2], 4
      %s1244 = int_to_ptr.vmem [resolvable:$true] %s1243
      %s1245 = sshll.u32 %s5, 4
      %s1246 = int_to_ptr.hbm [resolvable:$true] %s1245
      %1251 = dma.vmem_to_hbm [thread:$0]  %s1244, 4096, %s1246, [#allocation3], 2048, 2048, 128
    $region25: #{tpu_custom_call.1} parent=1 // pred_fallthru
      _
    // Predicated region
    $region26: #{tpu_custom_call.1} parent=1 // pred_check
      _
    $region27: #{tpu_custom_call.1} parent=1 // pred_check_branch
      %1253 = sbr.rel (0) target = $region29
    $region28: #{tpu_custom_call.1} parent=1 // pred_region
      %1255 = dma.done [#allocation3], 4096
    $region29: #{tpu_custom_call.1} parent=1 // pred_fallthru
      _
    %1256 = vsyncpa [#allocation3], 1

</llo_original>
